<compile_context>
chip_gen: v7x
topology: tpu7x:2x2x1
jax: 0.10.0
libtpu: 0.0.40
codegen_flags: <defaults>
</compile_context>

<pallas_src>
import jax
import jax.numpy as jnp
from jax.experimental import pallas as pl
from jax.experimental.pallas import tpu as pltpu


def _round_up(x, m):
    return (x + m - 1) // m * m


def _vmem_limit_bytes():
    """Per-generation VMEM ceiling (~85% of physical), safe fallback 56 MiB."""
    try:
        cap = int(pltpu.get_tpu_info().vmem_capacity_bytes)
        return int(cap * 0.85)
    except Exception:
        return 56 * 1024 * 1024   # fits under v7x's 64 MiB/TC


def residual_mlp_kernel(x_ref, w1_ref, b1_ref, w2_ref, b2_ref, w3_ref, b3_ref,
                        o_ref):
    """One batch tile per grid step; weights/biases resident in VMEM."""
    cdt = w1_ref.dtype                               # MXU compute dtype
    x = x_ref[...]                                   # (tb, Dp), compute dtype
    x_f32 = x.astype(jnp.float32)                    # residual add in f32

    # relu(fc1(x))
    h1 = jnp.dot(x, w1_ref[...], preferred_element_type=jnp.float32)
    h1 = jnp.maximum(h1 + b1_ref[...], 0.0)

    # relu(fc2(.) + identity)
    h2 = jnp.dot(h1.astype(cdt), w2_ref[...],
                 preferred_element_type=jnp.float32)
    h2 = jnp.maximum(h2 + b2_ref[...] + x_f32, 0.0)

    # fc3(.)
    out = jnp.dot(h2.astype(cdt), w3_ref[...],
                  preferred_element_type=jnp.float32)
    o_ref[...] = (out + b3_ref[...]).astype(o_ref.dtype)


def prepare_residual_mlp_params(w1, b1, w2, b2, w3, b3, *,
                                compute_dtype=jnp.bfloat16):
    """Pad/transpose/cast PyTorch-layout (out, in) params ONCE (hoisted)."""
    H, D = w1.shape
    C = w3.shape[0]
    assert D == H, "residual connection requires input_size == hidden_size"
    Dp, Hp, Cp = _round_up(D, 128), _round_up(H, 128), _round_up(C, 128)
    assert Dp == Hp

    # Zero padding is exact: padded columns stay 0 through relu/matmul/residual.
    return {
        "w1t": jnp.pad(w1.T, ((0, Dp - D), (0, Hp - H))).astype(compute_dtype),
        "b1": jnp.pad(b1, (0, Hp - H)).reshape(1, Hp).astype(jnp.float32),
        "w2t": jnp.pad(w2.T, ((0, Hp - H), (0, Hp - H))).astype(compute_dtype),
        "b2": jnp.pad(b2, (0, Hp - H)).reshape(1, Hp).astype(jnp.float32),
        "w3t": jnp.pad(w3.T, ((0, Hp - H), (0, Cp - C))).astype(compute_dtype),
        "b3": jnp.pad(b3, (0, Cp - C)).reshape(1, Cp).astype(jnp.float32),
        "dims": (D, H, C, Dp, Hp, Cp),
        "compute_dtype": compute_dtype,
    }


def residual_mlp_apply(x, params, *, batch_tile=256, out_dtype=None):
    """x: (B, D) float32.  params: output of prepare_residual_mlp_params."""
    D, H, C, Dp, Hp, Cp = params["dims"]
    compute_dtype = params["compute_dtype"]
    B, D_in = x.shape
    assert D_in == D
    out_dtype = x.dtype if out_dtype is None else out_dtype

    # Per-call glue: only x is padded/cast here (weights already prepared).
    xp = jnp.pad(x, ((0, 0), (0, Dp - D))).astype(compute_dtype)

    # --- VMEM budget (weights + biases + per-tile working set) -------------
    vmem_limit = _vmem_limit_bytes()
    budget = int(vmem_limit * 0.9)
    cdt_size = jnp.dtype(compute_dtype).itemsize
    out_size = jnp.dtype(out_dtype).itemsize
    resident_bytes = (Dp * Hp + Hp * Hp + Hp * Cp) * cdt_size + (2 * Hp + Cp) * 4
    if resident_bytes > budget:
        # TODO(synk): hidden-dim split grid axis with pl.when-guarded f32
        # accumulators for weights that do not fit in VMEM (large H on v7x).
        raise NotImplementedError(
            f"resident weights ({resident_bytes/2**20:.1f} MiB) exceed VMEM "
            f"budget ({budget/2**20:.1f} MiB); hidden-dim split not implemented")

    def per_tile_bytes(t):
        return (2 * t * Dp * cdt_size      # x tile, double-buffered
                + 2 * t * Cp * out_size    # out tile, double-buffered
                + t * Dp * 4               # x_f32 residual copy
                + 2 * t * Hp * 4           # h1, h2 in f32
                + 2 * t * Hp * cdt_size)   # bf16 cast copies feeding the MXU

    # --- batch tile: target >= 4 grid steps (keeps both v7x TCs busy and the
    # x/out double-buffer pipelining), tiles a multiple of 16 -----------------
    if B <= 16:
        tb = B                                  # full-extent single block
    else:
        tb = min(batch_tile, max(16, _round_up(pl.cdiv(B, 4), 16)))
    while tb > 16 and resident_bytes + per_tile_bytes(tb) > budget:
        tb = max(16, _round_up(tb // 2, 16))

    grid = (pl.cdiv(B, tb),)                    # partial last tile is clipped
    resident = pl.Buffered(1)                   # weights: constant block index

    flops = 2 * B * (Dp * Hp + Hp * Hp + Hp * Cp)
    bytes_accessed = (B * Dp * cdt_size
                      + (Dp * Hp + Hp * Hp + Hp * Cp) * cdt_size
                      + (2 * Hp + Cp) * 4
                      + B * Cp * out_size)

    out_padded = pl.pallas_call(
        residual_mlp_kernel,
        out_shape=jax.ShapeDtypeStruct((B, Cp), out_dtype),
        grid_spec=pltpu.PrefetchScalarGridSpec(
            num_scalar_prefetch=0,
            grid=grid,
            in_specs=[
                pl.BlockSpec((tb, Dp), lambda i: (i, 0)),                          # x
                pl.BlockSpec((Dp, Hp), lambda i: (0, 0), pipeline_mode=resident),  # w1^T
                pl.BlockSpec((1, Hp), lambda i: (0, 0), pipeline_mode=resident),   # b1
                pl.BlockSpec((Hp, Hp), lambda i: (0, 0), pipeline_mode=resident),  # w2^T
                pl.BlockSpec((1, Hp), lambda i: (0, 0), pipeline_mode=resident),   # b2
                pl.BlockSpec((Hp, Cp), lambda i: (0, 0), pipeline_mode=resident),  # w3^T
                pl.BlockSpec((1, Cp), lambda i: (0, 0), pipeline_mode=resident),   # b3
            ],
            out_specs=pl.BlockSpec((tb, Cp), lambda i: (i, 0)),
        ),
        compiler_params=pltpu.CompilerParams(
            dimension_semantics=("parallel",),        # megacore / dual-TC shard
            vmem_limit_bytes=vmem_limit,
        ),
        cost_estimate=pl.CostEstimate(
            flops=flops, transcendentals=0, bytes_accessed=bytes_accessed),
    )(xp, params["w1t"], params["b1"], params["w2t"], params["b2"],
      params["w3t"], params["b3"])

    return out_padded[:, :C]


def residual_mlp(x, w1, b1, w2, b2, w3, b3, *, batch_tile=256,
                 compute_dtype=jnp.bfloat16, out_dtype=None):
    """One-off convenience wrapper (prefer hoisting prepare_... out of the
    per-call path as done in __main__)."""
    params = prepare_residual_mlp_params(w1, b1, w2, b2, w3, b3,
                                         compute_dtype=compute_dtype)
    return residual_mlp_apply(x, params, batch_tile=batch_tile,
                              out_dtype=out_dtype)


def residual_mlp_ref(x, w1, b1, w2, b2, w3, b3):
    """Pure-JAX reference matching the PyTorch forward."""
    identity = x
    out = jax.nn.relu(x @ w1.T + b1)
    out = jax.nn.relu(out @ w2.T + b2 + identity)
    return out @ w3.T + b3


if __name__ == "__main__":
    # Small shapes implied by the module (input_size == hidden_size so the
    # residual add is valid).
    batch = 8
    input_size = 32
    hidden_size = 32
    num_classes = 16

    key = jax.random.PRNGKey(0)
    kx, k1, k2, k3, kb1, kb2, kb3 = jax.random.split(key, 7)

    x = jax.random.normal(kx, (batch, input_size), dtype=jnp.float32)
    # PyTorch Linear layouts: weight (out, in), bias (out,).
    w1 = jax.random.normal(k1, (hidden_size, input_size), jnp.float32) * 0.1
    b1 = jax.random.normal(kb1, (hidden_size,), jnp.float32) * 0.1
    w2 = jax.random.normal(k2, (hidden_size, hidden_size), jnp.float32) * 0.1
    b2 = jax.random.normal(kb2, (hidden_size,), jnp.float32) * 0.1
    w3 = jax.random.normal(k3, (num_classes, hidden_size), jnp.float32) * 0.1
    b3 = jax.random.normal(kb3, (num_classes,), jnp.float32) * 0.1

    ref = residual_mlp_ref(x, w1, b1, w2, b2, w3, b3)

    # Fast path: params prepared ONCE (hoisted out of the forward), bf16
    # operands with f32 accumulation, bf16 output writeback.
    params_bf16 = prepare_residual_mlp_params(
        w1, b1, w2, b2, w3, b3, compute_dtype=jnp.bfloat16)
    fwd_bf16 = jax.jit(
        lambda xx: residual_mlp_apply(xx, params_bf16, out_dtype=jnp.bfloat16))
    out_bf16 = jax.block_until_ready(fwd_bf16(x))
    assert out_bf16.shape == (batch, num_classes)
    assert out_bf16.dtype == jnp.bfloat16
    assert jnp.allclose(out_bf16.astype(jnp.float32), ref, atol=1e-1, rtol=1e-1), \
        "bf16 kernel mismatch vs reference"

    # Full-precision path: tight check against the f32 reference.
    params_f32 = prepare_residual_mlp_params(
        w1, b1, w2, b2, w3, b3, compute_dtype=jnp.float32)
    fwd_f32 = jax.jit(lambda xx: residual_mlp_apply(xx, params_f32))
    out_f32 = jax.block_until_ready(fwd_f32(x))
    assert out_f32.shape == (batch, num_classes)
    assert out_f32.dtype == jnp.float32
    assert jnp.allclose(out_f32, ref, atol=1e-4, rtol=1e-4), \
        "f32 kernel mismatch vs reference"

    print("KERNEL_OK")
</pallas_src>

<mosaic_0001>
module attributes {stable_mosaic.version = 11 : i64} {
  func.func @residual_mlp_kernel(%arg0: i32, %arg1: memref<8x128xbf16, #tpu.memory_space<vmem>>, %arg2: memref<128x128xbf16, #tpu.memory_space<vmem>>, %arg3: memref<1x128xf32, #tpu.memory_space<vmem>>, %arg4: memref<128x128xbf16, #tpu.memory_space<vmem>>, %arg5: memref<1x128xf32, #tpu.memory_space<vmem>>, %arg6: memref<128x128xbf16, #tpu.memory_space<vmem>>, %arg7: memref<1x128xf32, #tpu.memory_space<vmem>>, %arg8: memref<8x128xbf16, #tpu.memory_space<vmem>>) attributes {dimension_semantics = [#tpu.dimension_semantics<parallel>], iteration_bounds = array<i64: 1>, scalar_prefetch = 0 : i64, scratch_operands = 0 : i64, tpu.core_type = #tpu.core_type<tc>, window_params = [{transform_indices = @transform_0, window_bounds = array<i64: 8, 128>}, {pipeline_mode = #tpu.pipeline_mode<synchronous>, transform_indices = @transform_1, window_bounds = array<i64: 128, 128>}, {pipeline_mode = #tpu.pipeline_mode<synchronous>, transform_indices = @transform_2, window_bounds = array<i64: 1, 128>}, {pipeline_mode = #tpu.pipeline_mode<synchronous>, transform_indices = @transform_3, window_bounds = array<i64: 128, 128>}, {pipeline_mode = #tpu.pipeline_mode<synchronous>, transform_indices = @transform_4, window_bounds = array<i64: 1, 128>}, {pipeline_mode = #tpu.pipeline_mode<synchronous>, transform_indices = @transform_5, window_bounds = array<i64: 128, 128>}, {pipeline_mode = #tpu.pipeline_mode<synchronous>, transform_indices = @transform_6, window_bounds = array<i64: 1, 128>}, {transform_indices = @transform_7, window_bounds = array<i64: 8, 128>}]} {
    %c0 = arith.constant 0 : index
    %c0_0 = arith.constant 0 : index
    %0 = vector.load %arg1[%c0, %c0_0] : memref<8x128xbf16, #tpu.memory_space<vmem>>, vector<8x128xbf16>
    %1 = arith.extf %0 : vector<8x128xbf16> to vector<8x128xf32>
    %c0_1 = arith.constant 0 : index
    %c0_2 = arith.constant 0 : index
    %2 = vector.load %arg2[%c0_1, %c0_2] : memref<128x128xbf16, #tpu.memory_space<vmem>>, vector<128x128xbf16>
    %cst = arith.constant dense<0.000000e+00> : vector<8x128xf32>
    %3 = tpu.matmul %0, %2, %cst {dimension_numbers = #tpu.dot_dimension_numbers<[1], [0], [0], [1], [0, 0, 1, 1], [], []>} : vector<8x128xbf16>, vector<128x128xbf16>, vector<8x128xf32> -> vector<8x128xf32>
    %c0_3 = arith.constant 0 : index
    %c0_4 = arith.constant 0 : index
    %4 = vector.load %arg3[%c0_3, %c0_4] : memref<1x128xf32, #tpu.memory_space<vmem>>, vector<1x128xf32>
    %5 = vector.broadcast %4 : vector<1x128xf32> to vector<8x128xf32>
    %6 = arith.addf %3, %5 : vector<8x128xf32>
    %cst_5 = arith.constant 0.000000e+00 : f32
    %7 = vector.broadcast %cst_5 : f32 to vector<8x128xf32>
    %8 = arith.maximumf %6, %7 : vector<8x128xf32>
    %9 = arith.truncf %8 : vector<8x128xf32> to vector<8x128xbf16>
    %c0_6 = arith.constant 0 : index
    %c0_7 = arith.constant 0 : index
    %10 = vector.load %arg4[%c0_6, %c0_7] : memref<128x128xbf16, #tpu.memory_space<vmem>>, vector<128x128xbf16>
    %cst_8 = arith.constant dense<0.000000e+00> : vector<8x128xf32>
    %11 = tpu.matmul %9, %10, %cst_8 {dimension_numbers = #tpu.dot_dimension_numbers<[1], [0], [0], [1], [0, 0, 1, 1], [], []>} : vector<8x128xbf16>, vector<128x128xbf16>, vector<8x128xf32> -> vector<8x128xf32>
    %c0_9 = arith.constant 0 : index
    %c0_10 = arith.constant 0 : index
    %12 = vector.load %arg5[%c0_9, %c0_10] : memref<1x128xf32, #tpu.memory_space<vmem>>, vector<1x128xf32>
    %13 = vector.broadcast %12 : vector<1x128xf32> to vector<8x128xf32>
    %14 = arith.addf %11, %13 : vector<8x128xf32>
    %15 = arith.addf %14, %1 : vector<8x128xf32>
    %cst_11 = arith.constant 0.000000e+00 : f32
    %16 = vector.broadcast %cst_11 : f32 to vector<8x128xf32>
    %17 = arith.maximumf %15, %16 : vector<8x128xf32>
    %18 = arith.truncf %17 : vector<8x128xf32> to vector<8x128xbf16>
    %c0_12 = arith.constant 0 : index
    %c0_13 = arith.constant 0 : index
    %19 = vector.load %arg6[%c0_12, %c0_13] : memref<128x128xbf16, #tpu.memory_space<vmem>>, vector<128x128xbf16>
    %cst_14 = arith.constant dense<0.000000e+00> : vector<8x128xf32>
    %20 = tpu.matmul %18, %19, %cst_14 {dimension_numbers = #tpu.dot_dimension_numbers<[1], [0], [0], [1], [0, 0, 1, 1], [], []>} : vector<8x128xbf16>, vector<128x128xbf16>, vector<8x128xf32> -> vector<8x128xf32>
    %c0_15 = arith.constant 0 : index
    %c0_16 = arith.constant 0 : index
    %21 = vector.load %arg7[%c0_15, %c0_16] : memref<1x128xf32, #tpu.memory_space<vmem>>, vector<1x128xf32>
    %22 = vector.broadcast %21 : vector<1x128xf32> to vector<8x128xf32>
    %23 = arith.addf %20, %22 : vector<8x128xf32>
    %24 = arith.truncf %23 : vector<8x128xf32> to vector<8x128xbf16>
    %c0_17 = arith.constant 0 : index
    %c0_18 = arith.constant 0 : index
    %25 = vector.load %arg8[%c0_17, %c0_18] : memref<8x128xbf16, #tpu.memory_space<vmem>>, vector<8x128xbf16>
    tpu.vector_store %arg8[%c0_17, %c0_18], %24 {strides = array<i32>} : memref<8x128xbf16, #tpu.memory_space<vmem>>, vector<8x128xbf16>,
    return
  }
  func.func @transform_0(%arg0: i32) -> (i32, i32) {
    %c0_i32 = arith.constant 0 : i32
    %c0_i32_0 = arith.constant 0 : i32
    return %arg0, %c0_i32 : i32, i32
  }
  func.func @transform_1(%arg0: i32) -> (i32, i32) {
    %c0_i32 = arith.constant 0 : i32
    %c0_i32_0 = arith.constant 0 : i32
    %c0_i32_1 = arith.constant 0 : i32
    return %c0_i32, %c0_i32_0 : i32, i32
  }
  func.func @transform_2(%arg0: i32) -> (i32, i32) {
    %c0_i32 = arith.constant 0 : i32
    %c0_i32_0 = arith.constant 0 : i32
    %c0_i32_1 = arith.constant 0 : i32
    return %c0_i32, %c0_i32_0 : i32, i32
  }
  func.func @transform_3(%arg0: i32) -> (i32, i32) {
    %c0_i32 = arith.constant 0 : i32
    %c0_i32_0 = arith.constant 0 : i32
    %c0_i32_1 = arith.constant 0 : i32
    return %c0_i32, %c0_i32_0 : i32, i32
  }
  func.func @transform_4(%arg0: i32) -> (i32, i32) {
    %c0_i32 = arith.constant 0 : i32
    %c0_i32_0 = arith.constant 0 : i32
    %c0_i32_1 = arith.constant 0 : i32
    return %c0_i32, %c0_i32_0 : i32, i32
  }
  func.func @transform_5(%arg0: i32) -> (i32, i32) {
    %c0_i32 = arith.constant 0 : i32
    %c0_i32_0 = arith.constant 0 : i32
    %c0_i32_1 = arith.constant 0 : i32
    return %c0_i32, %c0_i32_0 : i32, i32
  }
  func.func @transform_6(%arg0: i32) -> (i32, i32) {
    %c0_i32 = arith.constant 0 : i32
    %c0_i32_0 = arith.constant 0 : i32
    %c0_i32_1 = arith.constant 0 : i32
    return %c0_i32, %c0_i32_0 : i32, i32
  }
  func.func @transform_7(%arg0: i32) -> (i32, i32) {
    %c0_i32 = arith.constant 0 : i32
    %c0_i32_0 = arith.constant 0 : i32
    return %arg0, %c0_i32 : i32, i32
  }
}

</mosaic_0001>

<llo_original>
// kernel: _lambda_.1
$region0: #{_lambda_.1}
  #allocation0 [shape = 'u32[]', space=smem, size = 0x4, offset = 0x4, fixed_abs, tag = 'smem constant byte address 0x4 - core index']
  #allocation1 [shape = 'u32[144,128]{1,0:T(1,128)}', space=vmem, size = 0x12000, scoped, tag = 'internal scratch']
  %s0 = inlined_call_operand.vmem [shape: bf16[8,128], index: 0, kind: input, shape index: {}]
  %s1 = inlined_call_operand.hbm [shape: bf16[128,128], index: 1, kind: input, shape index: {}]
  %s2 = inlined_call_operand.vmem [shape: f32[1,128], index: 2, kind: input, shape index: {}]
  %s3 = inlined_call_operand.hbm [shape: bf16[128,128], index: 3, kind: input, shape index: {}]
  %s4 = inlined_call_operand.vmem [shape: f32[1,128], index: 4, kind: input, shape index: {}]
  %s5 = inlined_call_operand.hbm [shape: bf16[128,128], index: 5, kind: input, shape index: {}]
  %s6 = inlined_call_operand.vmem [shape: f32[1,128], index: 6, kind: input, shape index: {}]
  %s7 = inlined_call_operand.hbm [shape: bf16[8,128], index: 7, kind: output, shape index: {}]
  %s8 = sld [smem:[#allocation0]]
  $region50: #{_lambda_.1} parent=0
    _
  %s10 = ssub.s32 1, %s8
  %s11 = scalar_select 0, %s10, %s8
  $region1: #{_lambda_.1} parent=0
    #allocation2 [shape = 'u8[32768]{0}', space=vmem, size = 0x8000, scoped, tag = 'input window, operand 1, single buffered']
    #allocation3 [shape = 's32[1]{0}', space=sflag, size = 0x4, scoped, tag = 'scoped memory for _lambda_.1']
    #allocation4 [shape = 's32[1]{0}', space=sflag, size = 0x4, scoped, tag = 'scoped memory for _lambda_.1']
    #allocation5 [shape = 'u8[32768]{0}', space=vmem, size = 0x8000, scoped, tag = 'input window, operand 3, single buffered']
    #allocation6 [shape = 's32[1]{0}', space=sflag, size = 0x4, scoped, tag = 'scoped memory for _lambda_.1']
    #allocation7 [shape = 'u8[32768]{0}', space=vmem, size = 0x8000, scoped, tag = 'input window, operand 5, single buffered']
    #allocation8 [shape = 'u8[2048]{0}', space=vmem, size = 0x800, scoped, tag = 'output window, operand 0, single buffered']
    %12 = vsyncpa [#allocation3], 0
    %13 = vsyncpa [#allocation6], 0
    %14 = vsyncpa [#allocation4], 0
    // Predicated region
    $region2: #{_lambda_.1} parent=1 // pred_check
      _
    $region3: #{_lambda_.1} parent=1 // pred_check_branch
      %16 = sbr.rel (0) target = $region5
    $region4: #{_lambda_.1} parent=1 // pred_region
      _
    $region5: #{_lambda_.1} parent=1 // pred_fallthru
      _
    // Predicated region
    $region6: #{_lambda_.1} parent=1 // pred_check
      _
    $region7: #{_lambda_.1} parent=1 // pred_check_branch
      %18 = sbr.rel (0) target = $region9
    $region8: #{_lambda_.1} parent=1 // pred_region
      %s20 = ssub.s32 1024, 1024
      %21 = vsyncadd [#allocation3], %s20
      %s22 = sshll.u32 [#allocation2], 4
      %s23 = int_to_ptr.vmem [resolvable:$true] %s22
      %28 = dma.hbm_to_vmem [thread:$0]  %s1, 1024, %s23, [#allocation3], 64, 64, 4
    $region9: #{_lambda_.1} parent=1 // pred_fallthru
      _
    // Predicated region
    $region10: #{_lambda_.1} parent=1 // pred_check
      _
    $region11: #{_lambda_.1} parent=1 // pred_check_branch
      %30 = sbr.rel (0) target = $region13
    $region12: #{_lambda_.1} parent=1 // pred_region
      _
    $region13: #{_lambda_.1} parent=1 // pred_fallthru
      _
    // Predicated region
    $region14: #{_lambda_.1} parent=1 // pred_check
      _
    $region15: #{_lambda_.1} parent=1 // pred_check_branch
      %32 = sbr.rel (0) target = $region17
    $region16: #{_lambda_.1} parent=1 // pred_region
      %s34 = ssub.s32 1024, 1024
      %35 = vsyncadd [#allocation6], %s34
      %s36 = sshll.u32 [#allocation5], 4
      %s37 = int_to_ptr.vmem [resolvable:$true] %s36
      %42 = dma.hbm_to_vmem [thread:$0]  %s3, 1024, %s37, [#allocation6], 64, 64, 4
    $region17: #{_lambda_.1} parent=1 // pred_fallthru
      _
    // Predicated region
    $region18: #{_lambda_.1} parent=1 // pred_check
      _
    $region19: #{_lambda_.1} parent=1 // pred_check_branch
      %44 = sbr.rel (0) target = $region21
    $region20: #{_lambda_.1} parent=1 // pred_region
      _
    $region21: #{_lambda_.1} parent=1 // pred_fallthru
      _
    // Predicated region
    $region22: #{_lambda_.1} parent=1 // pred_check
      _
    $region23: #{_lambda_.1} parent=1 // pred_check_branch
      %46 = sbr.rel (0) target = $region25
    $region24: #{_lambda_.1} parent=1 // pred_region
      %s48 = ssub.s32 1024, 1024
      %49 = vsyncadd [#allocation6], %s48
      %s50 = sshll.u32 [#allocation7], 4
      %s51 = int_to_ptr.vmem [resolvable:$true] %s50
      %56 = dma.hbm_to_vmem [thread:$0]  %s5, 1024, %s51, [#allocation6], 64, 64, 4
    $region25: #{_lambda_.1} parent=1 // pred_fallthru
      _
    // Predicated region
    $region26: #{_lambda_.1} parent=1 // pred_check
      _
    $region27: #{_lambda_.1} parent=1 // pred_check_branch
      %58 = sbr.rel (0) target = $region29
    $region28: #{_lambda_.1} parent=1 // pred_region
      _
    $region29: #{_lambda_.1} parent=1 // pred_fallthru
      _
    // Predicated region
    $region30: #{_lambda_.1} parent=1 // pred_check
      _
    $region31: #{_lambda_.1} parent=1 // pred_check_branch
      %60 = sbr.rel (0) target = $region33
    $region32: #{_lambda_.1} parent=1 // pred_region
      %61 = dma.done [#allocation3], 1024
    $region33: #{_lambda_.1} parent=1 // pred_fallthru
      _
    // Predicated region
    $region34: #{_lambda_.1} parent=1 // pred_check
      _
    $region35: #{_lambda_.1} parent=1 // pred_check_branch
      %63 = sbr.rel (0) target = $region37
    $region36: #{_lambda_.1} parent=1 // pred_region
      %64 = dma.done [#allocation6], 1024
    $region37: #{_lambda_.1} parent=1 // pred_fallthru
      _
    // Predicated region
    $region38: #{_lambda_.1} parent=1 // pred_check
      _
    $region39: #{_lambda_.1} parent=1 // pred_check_branch
      %66 = sbr.rel (0) target = $region41
    $region40: #{_lambda_.1} parent=1 // pred_region
      %67 = dma.done [#allocation6], 1024
    $region41: #{_lambda_.1} parent=1 // pred_fallthru
      _
    %v69 = vld [vmem:[%s0] sm:$0xf]
    %v70 = vunpack.c.l.bf16 %v69
    %v71 = vld [vmem:[#allocation2] sm:$0xf]
    %v72 = vld [vmem:[#allocation2 + $0x4] sm:$0xf]
    %v73 = vld [vmem:[#allocation2 + $0x8] sm:$0xf]
    %v74 = vld [vmem:[#allocation2 + $0xc] sm:$0xf]
    %v75 = vld [vmem:[#allocation2 + $0x10] sm:$0xf]
    %v76 = vld [vmem:[#allocation2 + $0x14] sm:$0xf]
    %v77 = vld [vmem:[#allocation2 + $0x18] sm:$0xf]
    %v78 = vld [vmem:[#allocation2 + $0x1c] sm:$0xf]
    %v79 = vld [vmem:[#allocation2 + $0x20] sm:$0xf]
    %v80 = vld [vmem:[#allocation2 + $0x24] sm:$0xf]
    %v81 = vld [vmem:[#allocation2 + $0x28] sm:$0xf]
    %v82 = vld [vmem:[#allocation2 + $0x2c] sm:$0xf]
    %v83 = vld [vmem:[#allocation2 + $0x30] sm:$0xf]
    %v84 = vld [vmem:[#allocation2 + $0x34] sm:$0xf]
    %v85 = vld [vmem:[#allocation2 + $0x38] sm:$0xf]
    %v86 = vld [vmem:[#allocation2 + $0x3c] sm:$0xf]
    %v87 = vld [vmem:[%s2] sm:$0x1]
    %v89 = vlaneseq
    %v90 = vshrl.u32 %v89, 7
    %v91 = vsub.s32 0, %v90
    %v92 = vrot.slane %v87, %v91
    %v110 = vunpack.c.l.b16 %v71
    %v111 = vunpack.c.l.b16 %v72
    %v112 = vunpack.c.l.b16 %v73
    %v113 = vunpack.c.l.b16 %v74
    %v114 = vunpack.c.l.b16 %v75
    %v115 = vunpack.c.l.b16 %v76
    %v116 = vunpack.c.l.b16 %v77
    %v117 = vunpack.c.l.b16 %v78
    %v118 = vunpack.c.l.b16 %v79
    %v119 = vunpack.c.l.b16 %v80
    %v120 = vunpack.c.l.b16 %v81
    %v121 = vunpack.c.l.b16 %v82
    %v122 = vunpack.c.l.b16 %v83
    %v123 = vunpack.c.l.b16 %v84
    %v124 = vunpack.c.l.b16 %v85
    %v125 = vunpack.c.l.b16 %v86
    %v126 = vpack.c.b16 %v111, %v110
    %v127 = vpack.c.b16 %v113, %v112
    %v128 = vpack.c.b16 %v115, %v114
    %v129 = vpack.c.b16 %v117, %v116
    %v130 = vpack.c.b16 %v119, %v118
    %v131 = vpack.c.b16 %v121, %v120
    %v132 = vpack.c.b16 %v123, %v122
    %v133 = vpack.c.b16 %v125, %v124
    %142 = vmatprep.subr.bf16.mxu0 0
    %143 = vmatpush1.bf16.msra.mxu0 %v126
    %144 = vmatprep.subr.bf16.mxu0 0
    %145 = vmatpush1.bf16.msra.mxu0 %v127
    %146 = vmatprep.subr.bf16.mxu0 0
    %147 = vmatpush1.bf16.msra.mxu0 %v128
    %148 = vmatprep.subr.bf16.mxu0 0
    %149 = vmatpush1.bf16.msra.mxu0 %v129
    %150 = vmatprep.subr.bf16.mxu0 0
    %151 = vmatpush1.bf16.msra.mxu0 %v130
    %152 = vmatprep.subr.bf16.mxu0 0
    %153 = vmatpush1.bf16.msra.mxu0 %v131
    %154 = vmatprep.subr.bf16.mxu0 0
    %155 = vmatpush1.bf16.msra.mxu0 %v132
    %156 = vmatprep.subr.bf16.mxu0 0
    %157 = vmatpush1.bf16.msra.mxu0 %v133
    %158 = vmatprep.subr.bf16.mxu0 0
    %159 = vmatpush1.bf16.msra.mxu0 0
    %160 = vmatprep.subr.bf16.mxu0 0
    %161 = vmatpush1.bf16.msra.mxu0 0
    %162 = vmatprep.subr.bf16.mxu0 0
    %163 = vmatpush1.bf16.msra.mxu0 0
    %164 = vmatprep.subr.bf16.mxu0 0
    %165 = vmatpush1.bf16.msra.mxu0 0
    %166 = vmatprep.subr.bf16.mxu0 0
    %167 = vmatpush1.bf16.msra.mxu0 0
    %168 = vmatprep.subr.bf16.mxu0 0
    %169 = vmatpush1.bf16.msra.mxu0 0
    %170 = vmatprep.subr.bf16.mxu0 0
    %171 = vmatpush1.bf16.msra.mxu0 0
    %172 = vmatprep.subr.bf16.mxu0 0
    %173 = vmatpush1.bf16.msra.mxu0 0
    %174 = vmatprep.mubr.bf16.mxu0 0
    %175 = vmatmul.mubr.bf16.gmra.mrb[0].mxu0 %v69
    %v176 = vpop.f32.mrb[0].mxu0
    %v177 = vadd.f32 %v92, %v176
    %v178 = vpop.f32.mrb[0].mxu0
    %v179 = vpop.f32.mrb[0].mxu0
    %v180 = vpop.f32.mrb[0].mxu0
    %181 = vdwg.mxu0
    %v182 = vmax.f32 %v177, 0.0
    %v183 = vpack.c.bf16 %v182, %v182
    %v184 = vld [vmem:[#allocation5] sm:$0xf]
    %v185 = vld [vmem:[#allocation5 + $0x4] sm:$0xf]
    %v186 = vld [vmem:[#allocation5 + $0x8] sm:$0xf]
    %v187 = vld [vmem:[#allocation5 + $0xc] sm:$0xf]
    %v188 = vld [vmem:[#allocation5 + $0x10] sm:$0xf]
    %v189 = vld [vmem:[#allocation5 + $0x14] sm:$0xf]
    %v190 = vld [vmem:[#allocation5 + $0x18] sm:$0xf]
    %v191 = vld [vmem:[#allocation5 + $0x1c] sm:$0xf]
    %v192 = vld [vmem:[#allocation5 + $0x20] sm:$0xf]
    %v193 = vld [vmem:[#allocation5 + $0x24] sm:$0xf]
    %v194 = vld [vmem:[#allocation5 + $0x28] sm:$0xf]
    %v195 = vld [vmem:[#allocation5 + $0x2c] sm:$0xf]
    %v196 = vld [vmem:[#allocation5 + $0x30] sm:$0xf]
    %v197 = vld [vmem:[#allocation5 + $0x34] sm:$0xf]
    %v198 = vld [vmem:[#allocation5 + $0x38] sm:$0xf]
    %v199 = vld [vmem:[#allocation5 + $0x3c] sm:$0xf]
    %v200 = vld [vmem:[%s4] sm:$0x1]
    %v202 = vlaneseq
    %v203 = vshrl.u32 %v202, 7
    %v204 = vsub.s32 0, %v203
    %v205 = vrot.slane %v200, %v204
    %v223 = vunpack.c.l.b16 %v184
    %v224 = vunpack.c.l.b16 %v185
    %v225 = vunpack.c.l.b16 %v186
    %v226 = vunpack.c.l.b16 %v187
    %v227 = vunpack.c.l.b16 %v188
    %v228 = vunpack.c.l.b16 %v189
    %v229 = vunpack.c.l.b16 %v190
    %v230 = vunpack.c.l.b16 %v191
    %v231 = vunpack.c.l.b16 %v192
    %v232 = vunpack.c.l.b16 %v193
    %v233 = vunpack.c.l.b16 %v194
    %v234 = vunpack.c.l.b16 %v195
    %v235 = vunpack.c.l.b16 %v196
    %v236 = vunpack.c.l.b16 %v197
    %v237 = vunpack.c.l.b16 %v198
    %v238 = vunpack.c.l.b16 %v199
    %v239 = vpack.c.b16 %v224, %v223
    %v240 = vpack.c.b16 %v226, %v225
    %v241 = vpack.c.b16 %v228, %v227
    %v242 = vpack.c.b16 %v230, %v229
    %v243 = vpack.c.b16 %v232, %v231
    %v244 = vpack.c.b16 %v234, %v233
    %v245 = vpack.c.b16 %v236, %v235
    %v246 = vpack.c.b16 %v238, %v237
    %255 = vmatprep.subr.bf16.mxu0 0
    %256 = vmatpush1.bf16.msra.mxu0 %v239
    %257 = vmatprep.subr.bf16.mxu0 0
    %258 = vmatpush1.bf16.msra.mxu0 %v240
    %259 = vmatprep.subr.bf16.mxu0 0
    %260 = vmatpush1.bf16.msra.mxu0 %v241
    %261 = vmatprep.subr.bf16.mxu0 0
    %262 = vmatpush1.bf16.msra.mxu0 %v242
    %263 = vmatprep.subr.bf16.mxu0 0
    %264 = vmatpush1.bf16.msra.mxu0 %v243
    %265 = vmatprep.subr.bf16.mxu0 0
    %266 = vmatpush1.bf16.msra.mxu0 %v244
    %267 = vmatprep.subr.bf16.mxu0 0
    %268 = vmatpush1.bf16.msra.mxu0 %v245
    %269 = vmatprep.subr.bf16.mxu0 0
    %270 = vmatpush1.bf16.msra.mxu0 %v246
    %271 = vmatprep.subr.bf16.mxu0 0
    %272 = vmatpush1.bf16.msra.mxu0 0
    %273 = vmatprep.subr.bf16.mxu0 0
    %274 = vmatpush1.bf16.msra.mxu0 0
    %275 = vmatprep.subr.bf16.mxu0 0
    %276 = vmatpush1.bf16.msra.mxu0 0
    %277 = vmatprep.subr.bf16.mxu0 0
    %278 = vmatpush1.bf16.msra.mxu0 0
    %279 = vmatprep.subr.bf16.mxu0 0
    %280 = vmatpush1.bf16.msra.mxu0 0
    %281 = vmatprep.subr.bf16.mxu0 0
    %282 = vmatpush1.bf16.msra.mxu0 0
    %283 = vmatprep.subr.bf16.mxu0 0
    %284 = vmatpush1.bf16.msra.mxu0 0
    %285 = vmatprep.subr.bf16.mxu0 0
    %286 = vmatpush1.bf16.msra.mxu0 0
    %287 = vmatprep.mubr.bf16.mxu0 0
    %288 = vmatmul.mubr.bf16.gmra.mrb[0].mxu0 %v183
    %v289 = vpop.f32.mrb[0].mxu0
    %v290 = vadd.f32 %v205, %v289
    %v291 = vpop.f32.mrb[0].mxu0
    %v292 = vpop.f32.mrb[0].mxu0
    %v293 = vpop.f32.mrb[0].mxu0
    %294 = vdwg.mxu0
    %v295 = vadd.f32 %v290, %v70
    %v296 = vmax.f32 %v295, 0.0
    %v297 = vpack.c.bf16 %v296, %v296
    %v298 = vld [vmem:[#allocation7] sm:$0xf]
    %v299 = vld [vmem:[#allocation7 + $0x4] sm:$0xf]
    %v300 = vld [vmem:[#allocation7 + $0x8] sm:$0xf]
    %v301 = vld [vmem:[#allocation7 + $0xc] sm:$0xf]
    %v302 = vld [vmem:[#allocation7 + $0x10] sm:$0xf]
    %v303 = vld [vmem:[#allocation7 + $0x14] sm:$0xf]
    %v304 = vld [vmem:[#allocation7 + $0x18] sm:$0xf]
    %v305 = vld [vmem:[#allocation7 + $0x1c] sm:$0xf]
    %v306 = vld [vmem:[#allocation7 + $0x20] sm:$0xf]
    %v307 = vld [vmem:[#allocation7 + $0x24] sm:$0xf]
    %v308 = vld [vmem:[#allocation7 + $0x28] sm:$0xf]
    %v309 = vld [vmem:[#allocation7 + $0x2c] sm:$0xf]
    %v310 = vld [vmem:[#allocation7 + $0x30] sm:$0xf]
    %v311 = vld [vmem:[#allocation7 + $0x34] sm:$0xf]
    %v312 = vld [vmem:[#allocation7 + $0x38] sm:$0xf]
    %v313 = vld [vmem:[#allocation7 + $0x3c] sm:$0xf]
    %v314 = vld [vmem:[%s6] sm:$0x1]
    %v316 = vlaneseq
    %v317 = vshrl.u32 %v316, 7
    %v318 = vsub.s32 0, %v317
    %v319 = vrot.slane %v314, %v318
    %v337 = vunpack.c.l.b16 %v298
    %v338 = vunpack.c.l.b16 %v299
    %v339 = vunpack.c.l.b16 %v300
    %v340 = vunpack.c.l.b16 %v301
    %v341 = vunpack.c.l.b16 %v302
    %v342 = vunpack.c.l.b16 %v303
    %v343 = vunpack.c.l.b16 %v304
    %v344 = vunpack.c.l.b16 %v305
    %v345 = vunpack.c.l.b16 %v306
    %v346 = vunpack.c.l.b16 %v307
    %v347 = vunpack.c.l.b16 %v308
    %v348 = vunpack.c.l.b16 %v309
    %v349 = vunpack.c.l.b16 %v310
    %v350 = vunpack.c.l.b16 %v311
    %v351 = vunpack.c.l.b16 %v312
    %v352 = vunpack.c.l.b16 %v313
    %v353 = vpack.c.b16 %v338, %v337
    %v354 = vpack.c.b16 %v340, %v339
    %v355 = vpack.c.b16 %v342, %v341
    %v356 = vpack.c.b16 %v344, %v343
    %v357 = vpack.c.b16 %v346, %v345
    %v358 = vpack.c.b16 %v348, %v347
    %v359 = vpack.c.b16 %v350, %v349
    %v360 = vpack.c.b16 %v352, %v351
    %369 = vmatprep.subr.bf16.mxu0 0
    %370 = vmatpush1.bf16.msra.mxu0 %v353
    %371 = vmatprep.subr.bf16.mxu0 0
    %372 = vmatpush1.bf16.msra.mxu0 %v354
    %373 = vmatprep.subr.bf16.mxu0 0
    %374 = vmatpush1.bf16.msra.mxu0 %v355
    %375 = vmatprep.subr.bf16.mxu0 0
    %376 = vmatpush1.bf16.msra.mxu0 %v356
    %377 = vmatprep.subr.bf16.mxu0 0
    %378 = vmatpush1.bf16.msra.mxu0 %v357
    %379 = vmatprep.subr.bf16.mxu0 0
    %380 = vmatpush1.bf16.msra.mxu0 %v358
    %381 = vmatprep.subr.bf16.mxu0 0
    %382 = vmatpush1.bf16.msra.mxu0 %v359
    %383 = vmatprep.subr.bf16.mxu0 0
    %384 = vmatpush1.bf16.msra.mxu0 %v360
    %385 = vmatprep.subr.bf16.mxu0 0
    %386 = vmatpush1.bf16.msra.mxu0 0
    %387 = vmatprep.subr.bf16.mxu0 0
    %388 = vmatpush1.bf16.msra.mxu0 0
    %389 = vmatprep.subr.bf16.mxu0 0
    %390 = vmatpush1.bf16.msra.mxu0 0
    %391 = vmatprep.subr.bf16.mxu0 0
    %392 = vmatpush1.bf16.msra.mxu0 0
    %393 = vmatprep.subr.bf16.mxu0 0
    %394 = vmatpush1.bf16.msra.mxu0 0
    %395 = vmatprep.subr.bf16.mxu0 0
    %396 = vmatpush1.bf16.msra.mxu0 0
    %397 = vmatprep.subr.bf16.mxu0 0
    %398 = vmatpush1.bf16.msra.mxu0 0
    %399 = vmatprep.subr.bf16.mxu0 0
    %400 = vmatpush1.bf16.msra.mxu0 0
    %401 = vmatprep.mubr.bf16.mxu0 0
    %402 = vmatmul.mubr.bf16.gmra.mrb[0].mxu0 %v297
    %v403 = vpop.f32.mrb[0].mxu0
    %v404 = vadd.f32 %v319, %v403
    %v405 = vpop.f32.mrb[0].mxu0
    %v406 = vpop.f32.mrb[0].mxu0
    %v407 = vpop.f32.mrb[0].mxu0
    %408 = vdwg.mxu0
    %v409 = vpack.c.bf16 %v404, %v404
    %410 = vst [vmem:[#allocation8] sm:$0xf] %v409
    // Predicated region
    $region42: #{_lambda_.1} parent=1 // pred_check
      _
    $region43: #{_lambda_.1} parent=1 // pred_check_branch
      %412 = sbr.rel (0) target = $region45
    $region44: #{_lambda_.1} parent=1 // pred_region
      %s414 = ssub.s32 64, 64
      %415 = vsyncadd [#allocation4], %s414
      %s417 = sshll.u32 [#allocation8], 4
      %s418 = int_to_ptr.vmem [resolvable:$true] %s417
      %420 = dma.vmem_to_hbm [thread:$0]  %s418, 64, %s7, [#allocation4]
    $region45: #{_lambda_.1} parent=1 // pred_fallthru
      _
    // Predicated region
    $region46: #{_lambda_.1} parent=1 // pred_check
      _
    $region47: #{_lambda_.1} parent=1 // pred_check_branch
      %422 = sbr.rel (0) target = $region49
    $region48: #{_lambda_.1} parent=1 // pred_region
      %423 = dma.done [#allocation4], 64
    $region49: #{_lambda_.1} parent=1 // pred_fallthru
      _
    %424 = vsyncpa [#allocation3], 1
    %425 = vsyncpa [#allocation6], 1
    %426 = vsyncpa [#allocation4], 1

</llo_original>
